<compile_context>
chip_gen: v7x
topology: tpu7x:2x2x1
jax: 0.10.0
libtpu: 0.0.40
codegen_flags: <defaults>
</compile_context>

<pallas_src>
import math

import jax
import jax.numpy as jnp
from jax.experimental import pallas as pl
from jax.experimental.pallas import tpu as pltpu


def _swap_kernel(x_ref, o_ref):
    # x_ref: (tm, tn) input tile; o_ref: (tn, tm) output tile.  Pure on-chip
    # (XLU) transpose; padded regions of edge blocks land in positions that the
    # output DMA clips, so masking stays correct.
    o_ref[...] = x_ref[...].T


def _vmem_capacity_bytes():
    """Physical per-TensorCore VMEM (64 MiB on v7x, 128 MiB on v5e/v6e)."""
    try:
        cap = getattr(pltpu.get_tpu_info(), "vmem_capacity_bytes", None)
        if cap:
            return int(cap)
    except Exception:  # older jax / interpret mode / no TPU visible
        pass
    return 64 * 1024 * 1024  # conservative default (v7x per-core VMEM)


def _budgets(tile_target_override=None):
    """Chip-aware (tile_target_bytes, vmem_limit_bytes)."""
    cap = _vmem_capacity_bytes()
    # 3/4 of physical, capped: v7x -> 48 MiB, v5e/v6e -> 96 MiB.
    vmem_limit = min((3 * cap) // 4, 96 * 1024 * 1024)
    # In and out tiles are the same size and each is double-buffered -> ~4x
    # tile resident; keep a /5 budget for headroom.
    if tile_target_override is not None:
        tile_target = max(4096, min(int(tile_target_override), vmem_limit // 5))
    else:
        tile_target = min(vmem_limit // 5, 16 * 1024 * 1024)
    return tile_target, vmem_limit


def _tiles(M, N, itemsize, target_bytes):
    """Pick (tm, tn) tiles for the (M, N) -> (N, M) swap.

    Each tile length is either the full axis (when the axis is shorter than one
    lane group of 128) or a multiple of 128, so both the input block and the
    transposed output block keep a lane-aligned (or full-axis) minor dim; the
    grid uses cdiv, so a non-128-divisible axis just gets one masked edge
    block instead of collapsing to a single full-axis tile.
    """
    target_elems = max(128 * 8, target_bytes // itemsize)

    def cap(dim):  # largest legal tile along `dim`
        return dim if dim < 128 else (dim // 128) * 128

    def rnd(v):    # round down to a multiple of 128, floor 128
        return max(128, (v // 128) * 128)

    cm, cn = cap(M), cap(N)
    side = rnd(math.isqrt(target_elems))          # ~square tiles by default
    tm = min(cm, side)
    tn = min(cn, rnd(target_elems // max(tm, 1)))
    # Budget a short N axis could not use goes back to M.
    tm = min(cm, max(tm, rnd(target_elems // max(tn, 1))))
    return tm, tn


def _with_min_steps(B, M, N, tm, tn, min_steps=4):
    """Split the largest tile until the grid has enough parallel steps
    (pipelining + v7x dual-TensorCore sharding), keeping 128-multiples."""
    def steps(dim, t):
        return -(-dim // t)

    for _ in range(8):
        if B * steps(M, tm) * steps(N, tn) >= min_steps:
            break
        if tm >= 256 and tm >= tn:
            tm = max(128, ((tm // 2) // 128) * 128)
        elif tn >= 256:
            tn = max(128, ((tn // 2) // 128) * 128)
        elif tm >= 256:
            tm = max(128, ((tm // 2) // 128) * 128)
        else:
            break
    return tm, tn


def _swap_last_two(x3, *, tile_target_bytes=None):
    """(B, M, N) -> (B, N, M) via a tiled Pallas transpose kernel."""
    B, M, N = x3.shape
    itemsize = x3.dtype.itemsize
    tile_target, vmem_limit = _budgets(tile_target_bytes)

    tm, tn = _tiles(M, N, itemsize, tile_target)
    tm, tn = _with_min_steps(B, M, N, tm, tn)

    grid = (B, pl.cdiv(M, tm), pl.cdiv(N, tn))

    return pl.pallas_call(
        _swap_kernel,
        out_shape=jax.ShapeDtypeStruct((B, N, M), x3.dtype),
        grid_spec=pltpu.PrefetchScalarGridSpec(
            num_scalar_prefetch=0,
            grid=grid,
            in_specs=[
                pl.BlockSpec((pl.Squeezed(), tm, tn), lambda b, i, j: (b, i, j)),
            ],
            # Output block's minor dim is tm: a multiple of 128 (lane-dense,
            # unmasked stores) whenever M >= 128; only the cdiv edge block (or
            # a genuinely short M axis, e.g. C < 128) is masked.
            out_specs=pl.BlockSpec((pl.Squeezed(), tn, tm), lambda b, i, j: (b, j, i)),
        ),
        compiler_params=pltpu.CompilerParams(
            dimension_semantics=("parallel", "parallel", "parallel"),
            vmem_limit_bytes=vmem_limit,
        ),
        cost_estimate=pl.CostEstimate(
            flops=0,
            transcendentals=0,
            bytes_accessed=2 * x3.size * itemsize,
        ),
    )(x3)


def _group_swap_split(tail_perm):
    """If tail_perm == (g, g+1, ..., n-1, 0, 1, ..., g-1) for some 0 < g < n
    (two contiguous groups swapped, order inside each preserved), return g."""
    n = len(tail_perm)
    if n < 2:
        return None
    g = tail_perm[0]
    if g == 0:
        return None
    expected = tuple(range(g, n)) + tuple(range(g))
    return g if tuple(tail_perm) == expected else None


def pallas_permute(x, *perm, min_pallas_bytes=1 << 20, tile_target_bytes=None):
    """Equivalent of torch.Tensor.permute(*perm)."""
    perm = tuple(int(p) for p in perm)
    assert len(perm) == x.ndim, "permutation rank must match input rank"
    assert sorted(perm) == list(range(x.ndim)), "invalid permutation"

    if perm == tuple(range(x.ndim)):
        return x
    if x.size == 0:
        return jnp.transpose(x, perm)

    # Tiny inputs: a Pallas launch is pure per-step overhead; let XLA fuse it.
    if x.size * x.dtype.itemsize < min_pallas_bytes:
        return jnp.transpose(x, perm)

    # Leading axes that stay in place become the (flattened) batch axis.
    k = 0
    while k < x.ndim and perm[k] == k:
        k += 1
    tail_perm = tuple(p - k for p in perm[k:])
    g = _group_swap_split(tail_perm)
    if g is None:
        # TODO(synk): permutations that are not a contiguous two-group swap of
        # the trailing axes (none occur in VSSM) fall back to XLA's transpose.
        return jnp.transpose(x, perm)

    tail_shape = x.shape[k:]
    batch = math.prod(x.shape[:k])          # == 1 when k == 0
    g1 = math.prod(tail_shape[:g])
    g2 = math.prod(tail_shape[g:])
    if g1 == 1 or g2 == 1:
        return jnp.transpose(x, perm)       # pure reshape, no data movement

    y3 = _swap_last_two(x.reshape(batch, g1, g2),
                        tile_target_bytes=tile_target_bytes)

    out_shape = tuple(x.shape[p] for p in perm)
    return y3.reshape(out_shape)


if __name__ == "__main__":
    key = jax.random.PRNGKey(0)

    # Small NHWC input (VSSM-style layout): batch=2, H=W=16, channels=4.
    B, H, W, C = 2, 16, 16, 4
    x = jax.random.normal(key, (B, H, W, C), dtype=jnp.float32)

    # Permute(0, 3, 1, 2): NHWC -> NCHW.  min_pallas_bytes=0 forces the Pallas
    # path even for these tiny demo tensors (real VSSM sizes take it by default).
    y = pallas_permute(x, 0, 3, 1, 2, min_pallas_bytes=0)
    jax.block_until_ready(y)
    y_ref = jnp.transpose(x, (0, 3, 1, 2))
    assert y.shape == y_ref.shape == (B, C, H, W)
    assert jnp.array_equal(y, y_ref)

    # Inverse Permute(0, 2, 3, 1): NCHW -> NHWC.
    z = pallas_permute(y, 0, 2, 3, 1, min_pallas_bytes=0)
    jax.block_until_ready(z)
    assert jnp.array_equal(z, x)

    # Multi-tile grid path (tiny tile target forces spatial tiling).
    x2 = jax.random.normal(jax.random.PRNGKey(1), (2, 32, 32, 8), dtype=jnp.float32)
    y2 = pallas_permute(x2, 0, 3, 1, 2, min_pallas_bytes=0, tile_target_bytes=4096)
    jax.block_until_ready(y2)
    assert jnp.array_equal(y2, jnp.transpose(x2, (0, 3, 1, 2)))
    z2 = pallas_permute(y2, 0, 2, 3, 1, min_pallas_bytes=0, tile_target_bytes=4096)
    jax.block_until_ready(z2)
    assert jnp.array_equal(z2, x2)

    # cdiv-grid edge-masking path: HW = 144 is >= 128 but not 128-divisible, so
    # that axis gets a 128-wide tile plus one masked 16-row edge block
    # (the shape class real VSSM spatial sizes 196/784/3136 fall into).
    x3 = jax.random.normal(jax.random.PRNGKey(2), (2, 12, 12, 8), dtype=jnp.float32)
    y3 = pallas_permute(x3, 0, 3, 1, 2, min_pallas_bytes=0)
    jax.block_until_ready(y3)
    assert jnp.array_equal(y3, jnp.transpose(x3, (0, 3, 1, 2)))
    z3 = pallas_permute(y3, 0, 2, 3, 1, min_pallas_bytes=0)
    jax.block_until_ready(z3)
    assert jnp.array_equal(z3, x3)

    # bf16 (VSSM activation dtype), lane-aligned shape.
    x4 = jax.random.normal(jax.random.PRNGKey(3), (2, 16, 16, 128), dtype=jnp.bfloat16)
    y4 = pallas_permute(x4, 0, 3, 1, 2, min_pallas_bytes=0)
    jax.block_until_ready(y4)
    assert jnp.array_equal(y4, jnp.transpose(x4, (0, 3, 1, 2)))

    print("KERNEL_OK")
</pallas_src>

<mosaic_0001>
module attributes {stable_mosaic.version = 11 : i64} {
  func.func @_swap_kernel(%arg0: i32, %arg1: i32, %arg2: i32, %arg3: memref<1x128x4xf32, #tpu.memory_space<vmem>>, %arg4: memref<1x4x128xf32, #tpu.memory_space<vmem>>) attributes {dimension_semantics = [#tpu.dimension_semantics<parallel>, #tpu.dimension_semantics<parallel>, #tpu.dimension_semantics<parallel>], iteration_bounds = array<i64: 2, 2, 1>, scalar_prefetch = 0 : i64, scratch_operands = 0 : i64, tpu.core_type = #tpu.core_type<tc>, window_params = [{transform_indices = @transform_0, window_bounds = array<i64: 1, 128, 4>}, {transform_indices = @transform_1, window_bounds = array<i64: 1, 4, 128>}]} {
    %c0 = arith.constant 0 : index
    %c0_0 = arith.constant 0 : index
    %c0_1 = arith.constant 0 : index
    %0 = vector.load %arg3[%c0, %c0_0, %c0_1] : memref<1x128x4xf32, #tpu.memory_space<vmem>>, vector<1x128x4xf32>
    %1 = vector.shape_cast %0 : vector<1x128x4xf32> to vector<128x4xf32>
    %2 = tpu.transpose %1, [1, 0] : vector<128x4xf32> -> vector<4x128xf32>
    %c0_2 = arith.constant 0 : index
    %c0_3 = arith.constant 0 : index
    %c0_4 = arith.constant 0 : index
    %3 = vector.load %arg4[%c0_2, %c0_3, %c0_4] : memref<1x4x128xf32, #tpu.memory_space<vmem>>, vector<1x4x128xf32>
    %4 = vector.shape_cast %3 : vector<1x4x128xf32> to vector<4x128xf32>
    %5 = vector.shape_cast %2 : vector<4x128xf32> to vector<1x4x128xf32>
    tpu.vector_store %arg4[%c0_2, %c0_3, %c0_4], %5 {strides = array<i32>} : memref<1x4x128xf32, #tpu.memory_space<vmem>>, vector<1x4x128xf32>,
    return
  }
  func.func @transform_0(%arg0: i32, %arg1: i32, %arg2: i32) -> (i32, i32, i32) {
    %c0_i32 = arith.constant 0 : i32
    return %arg0, %arg1, %arg2 : i32, i32, i32
  }
  func.func @transform_1(%arg0: i32, %arg1: i32, %arg2: i32) -> (i32, i32, i32) {
    %c0_i32 = arith.constant 0 : i32
    return %arg0, %arg2, %arg1 : i32, i32, i32
  }
}

</mosaic_0001>

<llo_original>
// kernel: tpu_custom_call.1
$region0: #{tpu_custom_call.1}
  #allocation0 [shape = 'u32[]', space=smem, size = 0x4, offset = 0x4, fixed_abs, tag = 'smem constant byte address 0x4 - core index']
  #allocation1 [shape = 'u32[144,128]{1,0:T(1,128)}', space=vmem, size = 0x12000, scoped, tag = 'internal scratch']
  %s0 = inlined_call_operand.vmem [shape: f32[2,256,4], index: 0, kind: input, shape index: {}]
  %s1 = inlined_call_operand.hbm [shape: f32[2,4,256], index: 1, kind: output, shape index: {}]
  %s2 = sld [smem:[#allocation0]]
  $region37: #{tpu_custom_call.1} parent=0
    _
  %s4 = ssub.s32 1, %s2
  %s5 = scalar_select 0, %s4, %s2
  $region1: #{tpu_custom_call.1} parent=0
    #allocation2 [shape = 'u8[4096]{0}', space=vmem, size = 0x1000, scoped, tag = 'output window, operand 0']
    #allocation3 [shape = 's32[2]{0}', space=sflag, size = 0x8, scoped, tag = 'scoped memory for tpu_custom_call.1']
    %6 = vsyncpa [#allocation3], 0
    %s7 = scalar_lea.sflag [#allocation3], 1
    %8 = vsyncpa %s7, 0
    loop: start=0, step=1, limit=6
    $region2: #{tpu_custom_call.1} parent=1 // loop_pre_header
      _
    $region3: #{tpu_custom_call.1} parent=1 // loop_header
      %s10 = sphi 0, %s14
      %p11 = scmp.ge.s32.totalorder %s10, 6
      %s17 = sphi 0, %s36
      %s18 = sphi 0, %s32
      %s19 = sphi 0, %s28
      %s20 = sphi 0, %s17
      %s21 = sphi 0, %s18
      %s22 = sphi 0, %s19
      %s23 = sphi 0, %s20
      %s24 = sphi 0, %s21
      %s25 = sphi 0, %s22
      %s43 = sphi 0, %s45
      %s46 = sphi 0, %s43
      %s47 = sphi 0, %s46
      %s63 = sphi 0, %s47
      %s73 = sphi 0, %s75
      %s76 = sphi 0, %s73
      %s77 = sphi 0, %s76
      %s93 = sphi 0, %s77
    $region4: #{tpu_custom_call.1} parent=1 // loop_header_branch
      %13 = sbr.rel (%p11) target = $region8
    $region5: #{tpu_custom_call.1} parent=1 // loop_body
      %s15 = ssub.s32 %s10, 1
      %s16 = ssub.s32 %s10, 2
      %s26 = sadd.s32 1, %s19
      %p27 = scmp.ge.s32.totalorder %s26, 1
      %s28 = scalar_select %p27, 0, %s26
      %s29 = sadd.s32 1, %s18
      %s30 = scalar_select %p27, %s29, %s18
      %p31 = scmp.ge.s32.totalorder %s30, 2
      %s32 = scalar_select %p31, 0, %s30
      %s33 = sadd.s32 1, %s17
      %s34 = scalar_select %p31, %s33, %s17
      %p35 = scmp.ge.s32.totalorder %s34, 2
      %s36 = scalar_select %p35, 0, %s34
      %s37 = ssub.s32 %s17, %s36
      %s38 = ssub.s32 %s18, %s32
      %s39 = sor.u32 %s37, %s38
      %s40 = ssub.s32 %s19, %s28
      %s41 = sor.u32 %s39, %s40
      %p42 = scmp.eq.s32.totalorder %s41, 0
      %s44 = sadd.s32 %s43, 1
      %s45 = scalar_select %p42, %s43, %s44
      %p48 = pneg %p42
      %p49 = scmp.eq.s32.totalorder %s10, 3
      %p50 = por %p48, %p49
      %p51 = scmp.ne.s32.totalorder %s43, %s46
      %p52 = scmp.eq.s32.totalorder %s10, 0
      %p53 = por %p51, %p52
      %p54 = scmp.ne.s32.totalorder %s43, %s46
      %p55 = scmp.eq.s32.totalorder %s15, 3
      %p56 = por %p54, %p55
      %p57 = scmp.ne.s32.totalorder %s46, %s47
      %p58 = scmp.eq.s32.totalorder %s15, 0
      %p59 = por %p57, %p58
      %p60 = scmp.ne.s32.totalorder %s46, %s47
      %p61 = scmp.eq.s32.totalorder %s16, 3
      %p62 = por %p60, %p61
      %p64 = scmp.ne.s32.totalorder %s47, %s63
      %p65 = scmp.eq.s32.totalorder %s16, 0
      %p66 = por %p64, %p65
      %s67 = ssub.s32 %s17, %s36
      %s68 = ssub.s32 %s19, %s28
      %s69 = sor.u32 %s67, %s68
      %s70 = ssub.s32 %s18, %s32
      %s71 = sor.u32 %s69, %s70
      %p72 = scmp.eq.s32.totalorder %s71, 0
      %s74 = sadd.s32 %s73, 1
      %s75 = scalar_select %p72, %s73, %s74
      %p78 = pneg %p72
      %p79 = scmp.eq.s32.totalorder %s10, 3
      %p80 = por %p78, %p79
      %p81 = scmp.ne.s32.totalorder %s73, %s76
      %p82 = scmp.eq.s32.totalorder %s10, 0
      %p83 = por %p81, %p82
      %p84 = scmp.ne.s32.totalorder %s73, %s76
      %p85 = scmp.eq.s32.totalorder %s15, 3
      %p86 = por %p84, %p85
      %p87 = scmp.ne.s32.totalorder %s76, %s77
      %p88 = scmp.eq.s32.totalorder %s15, 0
      %p89 = por %p87, %p88
      %p90 = scmp.ne.s32.totalorder %s76, %s77
      %p91 = scmp.eq.s32.totalorder %s16, 3
      %p92 = por %p90, %p91
      %p94 = scmp.ne.s32.totalorder %s77, %s93
      %p95 = scmp.eq.s32.totalorder %s16, 0
      %p96 = por %p94, %p95
      %p97 = scmp.le.s32.totalorder 1, %s10
      %p98 = scmp.lt.s32.totalorder %s10, 5
      %p99 = pnand %p97, %p98
      %p100 = pneg %p99
      // Predicated region
      $region9: #{tpu_custom_call.1} parent=5 // pred_check
        _
      $region10: #{tpu_custom_call.1} parent=5 // pred_check_branch
        %102 = sbr.rel (%p99) target = $region12
      $region11: #{tpu_custom_call.1} parent=5 // pred_region
        %s103 = ssub.s32 %s10, 1
      $region12: #{tpu_custom_call.1} parent=5 // pred_fallthru
        _
      %p104 = scmp.lt.s32.totalorder %s10, 4
      // Predicated region
      $region13: #{tpu_custom_call.1} parent=5 // pred_check
        %p105 = pneg %p104
      $region14: #{tpu_custom_call.1} parent=5 // pred_check_branch
        %107 = sbr.rel (%p105) target = $region16
      $region15: #{tpu_custom_call.1} parent=5 // pred_region
        // Predicated region
        $region17: #{tpu_custom_call.1} parent=15 // pred_check
          %p108 = pneg %p53
        $region18: #{tpu_custom_call.1} parent=15 // pred_check_branch
          %110 = sbr.rel (%p108) target = $region20
        $region19: #{tpu_custom_call.1} parent=15 // pred_region
          %s111 = smul.u32 16, %s18
          %p112 = scmp.lt.s32.totalorder %s17, 1
          %s113 = scalar_select %p112, %s17, 1
          %p114 = scmp.lt.s32.totalorder %s111, 31
          %s115 = scalar_select %p114, %s111, 31
          %p116 = scmp.lt.s32.totalorder %s19, 0
          %s117 = scalar_select %p116, %s19, 0
          %s118 = sadd.s32 %s117, %s115
          %s119 = smul.addr %s113, 32
          %s120 = sadd.s32 %s118, %s119
          %s121 = smul.addr %s120, 8
          %s122 = scalar_lea.vmem %s0, %s121
          %s123 = smul.u32 16, %s18
        $region20: #{tpu_custom_call.1} parent=15 // pred_fallthru
          _
      $region16: #{tpu_custom_call.1} parent=5 // pred_fallthru
        _
      %p124 = scmp.le.s32.totalorder 1, %s10
      %p125 = scmp.lt.s32.totalorder %s10, 5
      %p126 = pnand %p124, %p125
      %p127 = pneg %p126
      // Predicated region
      $region21: #{tpu_custom_call.1} parent=5 // pred_check
        _
      $region22: #{tpu_custom_call.1} parent=5 // pred_check_branch
        %129 = sbr.rel (%p126) target = $region24
      $region23: #{tpu_custom_call.1} parent=5 // pred_region
        %s130 = ssub.s32 %s10, 1
        %s131 = smul.u32 16, %s21
        %p132 = scmp.lt.s32.totalorder %s20, 1
        %s133 = scalar_select %p132, %s20, 1
        %p134 = scmp.lt.s32.totalorder %s131, 31
        %s135 = scalar_select %p134, %s131, 31
        %p136 = scmp.lt.s32.totalorder %s22, 0
        %s137 = scalar_select %p136, %s22, 0
        %s138 = sadd.s32 %s137, %s135
        %s139 = smul.addr %s133, 32
        %s140 = sadd.s32 %s138, %s139
        %s141 = smul.addr %s140, 8
        %s142 = scalar_lea.vmem %s0, %s141
        %p143 = pneg %p59
        %p144 = pneg %p56
        %p145 = pneg %p89
        %p146 = pneg %p86
        %s147 = sand.u32 %s76, 1
        %s148 = scalar_lea.sflag [#allocation3], %s147
        %s149 = sand.u32 %s76, 1
        %s150 = smul.addr %s149, 4
        %s151 = scalar_lea.vmem [#allocation2], %s150
        %s152 = smul.u32 16, %s21
        %p153 = scmp.lt.s32.totalorder %s20, 1
        %s154 = scalar_select %p153, %s20, 1
        %p155 = scmp.lt.s32.totalorder %s152, 31
        %s156 = scalar_select %p155, %s152, 31
        %p157 = scmp.lt.s32.totalorder %s22, 0
        %s158 = scalar_select %p157, %s22, 0
        %s159 = sadd.s32 %s158, %s156
        %s160 = smul.addr %s154, 32
        %s161 = sadd.s32 %s159, %s160
        %s162 = smul.addr %s161, 8
        %s163 = scalar_lea.vmem %s0, %s162
        %s164 = smul.u32 16, %s21
        %v165 = vld [vmem:[%s163] sm:$0xff]
        %v166 = vld [vmem:[%s163 + $0x8] sm:$0xff]
        %v167 = vld [vmem:[%s163 + $0x10] sm:$0xff]
        %v168 = vld [vmem:[%s163 + $0x18] sm:$0xff]
        %v169 = vld [vmem:[%s163 + $0x20] sm:$0xff]
        %v170 = vld [vmem:[%s163 + $0x28] sm:$0xff]
        %v171 = vld [vmem:[%s163 + $0x30] sm:$0xff]
        %v172 = vld [vmem:[%s163 + $0x38] sm:$0xff]
        %v173 = vld [vmem:[%s163 + $0x40] sm:$0xff]
        %v174 = vld [vmem:[%s163 + $0x48] sm:$0xff]
        %v175 = vld [vmem:[%s163 + $0x50] sm:$0xff]
        %v176 = vld [vmem:[%s163 + $0x58] sm:$0xff]
        %v177 = vld [vmem:[%s163 + $0x60] sm:$0xff]
        %v178 = vld [vmem:[%s163 + $0x68] sm:$0xff]
        %v179 = vld [vmem:[%s163 + $0x70] sm:$0xff]
        %v180 = vld [vmem:[%s163 + $0x78] sm:$0xff]
        %181 = vxpose.xlu0.b32.start [1/16] %v165, 128
        %182 = vxpose.xlu0.b32.cont [2/16] %v166, 128
        %183 = vxpose.xlu0.b32.cont [3/16] %v167, 128
        %184 = vxpose.xlu0.b32.cont [4/16] %v168, 128
        %185 = vxpose.xlu0.b32.cont [5/16] %v169, 128
        %186 = vxpose.xlu0.b32.cont [6/16] %v170, 128
        %187 = vxpose.xlu0.b32.cont [7/16] %v171, 128
        %188 = vxpose.xlu0.b32.cont [8/16] %v172, 128
        %189 = vxpose.xlu0.b32.cont [9/16] %v173, 128
        %190 = vxpose.xlu0.b32.cont [10/16] %v174, 128
        %191 = vxpose.xlu0.b32.cont [11/16] %v175, 128
        %192 = vxpose.xlu0.b32.cont [12/16] %v176, 128
        %193 = vxpose.xlu0.b32.cont [13/16] %v177, 128
        %194 = vxpose.xlu0.b32.cont [14/16] %v178, 128
        %195 = vxpose.xlu0.b32.cont [15/16] %v179, 128
        %196 = vxpose.xlu0.b32.end [16/16] %v180, 128
        %v197 = vpop.trf.xlu0
        %v198 = vpop.trf.xlu0
        %v199 = vpop.trf.xlu0
        %v200 = vpop.trf.xlu0
        %v201 = vpop.trf.xlu0
        %v202 = vpop.trf.xlu0
        %v203 = vpop.trf.xlu0
        %v204 = vpop.trf.xlu0
        %v205 = vpop.trf.xlu0
        %v206 = vpop.trf.xlu0
        %v207 = vpop.trf.xlu0
        %v208 = vpop.trf.xlu0
        %v209 = vpop.trf.xlu0
        %v210 = vpop.trf.xlu0
        %v211 = vpop.trf.xlu0
        %v212 = vpop.trf.xlu0
        %213 = vst [vmem:[%s151] sm:$0xf] %v197
        %s214 = sand.u32 %s76, 1
        %s215 = scalar_lea.sflag [#allocation3], %s214
        %s216 = sand.u32 %s76, 1
        %s217 = smul.addr %s216, 4
        %s218 = scalar_lea.vmem [#allocation2], %s217
        // Predicated region
        $region25: #{tpu_custom_call.1} parent=23 // pred_check
          %p219 = pneg %p86
        $region26: #{tpu_custom_call.1} parent=23 // pred_check_branch
          %221 = sbr.rel (%p219) target = $region28
        $region27: #{tpu_custom_call.1} parent=23 // pred_region
          %s223 = ssub.s32 64, 64
          %224 = vsyncadd %s215, %s223
          %s225 = smul.addr %s22, 2
          %s226 = sadd.s32 %s21, %s225
          %s227 = smul.addr %s20, 2
          %s228 = sadd.s32 %s226, %s227
          %s229 = smul.addr %s228, 64
          %s230 = scalar_lea.hbm %s1, %s229
          %s232 = sshll.u32 %s218, 4
          %s233 = int_to_ptr.vmem [resolvable:$true] %s232
          %235 = dma.vmem_to_hbm [thread:$0]  %s233, 64, %s230, %s215
        $region28: #{tpu_custom_call.1} parent=23 // pred_fallthru
          _
      $region24: #{tpu_custom_call.1} parent=5 // pred_fallthru
        _
      %p236 = scmp.le.s32.totalorder 2, %s10
      // Predicated region
      $region29: #{tpu_custom_call.1} parent=5 // pred_check
        %p237 = pneg %p236
      $region30: #{tpu_custom_call.1} parent=5 // pred_check_branch
        %239 = sbr.rel (%p237) target = $region32
      $region31: #{tpu_custom_call.1} parent=5 // pred_region
        %s240 = ssub.s32 %s10, 2
        // Predicated region
        $region33: #{tpu_custom_call.1} parent=31 // pred_check
          %p241 = pneg %p92
        $region34: #{tpu_custom_call.1} parent=31 // pred_check_branch
          %243 = sbr.rel (%p241) target = $region36
        $region35: #{tpu_custom_call.1} parent=31 // pred_region
          %s244 = sand.u32 %s77, 1
          %s245 = scalar_lea.sflag [#allocation3], %s244
          %s246 = sand.u32 %s77, 1
          %s247 = smul.addr %s246, 4
          %s248 = scalar_lea.vmem [#allocation2], %s247
          %249 = dma.done %s245, 64
        $region36: #{tpu_custom_call.1} parent=31 // pred_fallthru
          _
      $region32: #{tpu_custom_call.1} parent=5 // pred_fallthru
        _
    $region6: #{tpu_custom_call.1} parent=1 // loop_footer
      %s14 = sadd.s32 1, %s10
    $region7: #{tpu_custom_call.1} parent=1 // loop_footer_branch
      %9 = sbr.rel target = $region3
    $region8: #{tpu_custom_call.1} parent=1 // loop_exit
      _
    %250 = vsyncpa [#allocation3], 1
    %s251 = scalar_lea.sflag [#allocation3], 1
    %252 = vsyncpa %s251, 1

</llo_original>
